<compile_context>
chip_gen: v7x
topology: tpu7x:2x2x1
jax: 0.10.0
libtpu: 0.0.40
codegen_flags: <defaults>
</compile_context>

<pallas_src>
import functools

import jax
import jax.numpy as jnp
from jax.experimental import pallas as pl
from jax.experimental.pallas import tpu as pltpu
from jax.scipy.linalg import block_diag


# -----------------------------------------------------------------------------
# Static dimension bookkeeping
# -----------------------------------------------------------------------------
def _align8(n):
    return ((n + 7) // 8) * 8


def compute_dims(var_len):
    plf_i, buy_i, sch_i, gnr_i, usr_i, etc_i = var_len
    plf_h, plf_o = 4, 2
    buy_o = 10
    sch_o = 3
    gnr_h, gnr_o = 12, 6
    usr_o = 4

    in_total = plf_i + buy_i + sch_i + gnr_i + usr_i + etc_i
    h1_total = plf_h + buy_o + sch_o + gnr_h + usr_o + etc_i      # layer-1 width
    h2_total = plf_o + buy_o + sch_o + gnr_o + usr_o + etc_i      # == prdDimI
    prd_h1 = int(h2_total / 2.0 + 0.5)
    prd_h2 = int(prd_h1 / 2.0 + 0.5)
    prd_o = 2

    # Row offsets of each weight block inside the packed slab (8-aligned).
    r_w1 = 0
    r_w2 = _align8(r_w1 + in_total)
    r_p1 = _align8(r_w2 + h1_total)
    r_p2 = _align8(r_p1 + h2_total)
    r_p3 = _align8(r_p2 + prd_h1)
    slab_rows = _align8(r_p3 + prd_h2)
    slab_cols = max(h1_total, h2_total, prd_h1, prd_h2, prd_o)

    return dict(
        plf_i=plf_i, buy_i=buy_i, sch_i=sch_i, gnr_i=gnr_i, usr_i=usr_i, etc_i=etc_i,
        plf_h=plf_h, plf_o=plf_o, buy_o=buy_o, sch_o=sch_o,
        gnr_h=gnr_h, gnr_o=gnr_o, usr_o=usr_o,
        in_total=in_total, h1_total=h1_total, h2_total=h2_total,
        prd_h1=prd_h1, prd_h2=prd_h2, prd_o=prd_o,
        r_w1=r_w1, r_w2=r_w2, r_p1=r_p1, r_p2=r_p2, r_p3=r_p3,
        slab_rows=slab_rows, slab_cols=slab_cols,
        # ReLU column ranges (only plf / gnr blocks are ReLU'd).
        relu1_a_end=plf_h,
        relu1_b_start=plf_h + buy_o + sch_o,
        relu1_b_end=plf_h + buy_o + sch_o + gnr_h,
        relu2_a_end=plf_o,
        relu2_b_start=plf_o + buy_o + sch_o,
        relu2_b_end=plf_o + buy_o + sch_o + gnr_o,
    )


# -----------------------------------------------------------------------------
# Kernel: whole forward pass, 3 inputs (x, weight slab, bias slab), 5 matmuls
# -----------------------------------------------------------------------------
def _net_kernel(x_ref, w_ref, b_ref, out_ref, *, dims):
    d = dims

    def dot(a, w):
        return jnp.dot(a, w, preferred_element_type=jnp.float32)

    x = x_ref[...]                                            # (B, in_total)

    # ---- layer 1: block-diag over all 5 branches + identity for `etc` -------
    w1 = w_ref[d["r_w1"]:d["r_w1"] + d["in_total"], 0:d["h1_total"]]
    h1 = dot(x, w1) + b_ref[0:1, 0:d["h1_total"]]
    col1 = jax.lax.broadcasted_iota(jnp.int32, (1, d["h1_total"]), 1)
    relu1 = (col1 < d["relu1_a_end"]) | (
        (col1 >= d["relu1_b_start"]) & (col1 < d["relu1_b_end"]))
    h1 = jnp.where(relu1, jnp.maximum(h1, 0.0), h1)

    # ---- layer 2: plf/gnr second linears + identities; output is the --------
    # ---- pre-concatenated head input [plf, buy, sch, gnr, usr, etc] ---------
    w2 = w_ref[d["r_w2"]:d["r_w2"] + d["h1_total"], 0:d["h2_total"]]
    h2 = dot(h1, w2) + b_ref[1:2, 0:d["h2_total"]]
    col2 = jax.lax.broadcasted_iota(jnp.int32, (1, d["h2_total"]), 1)
    relu2 = (col2 < d["relu2_a_end"]) | (
        (col2 >= d["relu2_b_start"]) & (col2 < d["relu2_b_end"]))
    h2 = jnp.where(relu2, jnp.maximum(h2, 0.0), h2)

    # ---- prediction head -----------------------------------------------------
    wp1 = w_ref[d["r_p1"]:d["r_p1"] + d["h2_total"], 0:d["prd_h1"]]
    z = jnp.maximum(dot(h2, wp1) + b_ref[2:3, 0:d["prd_h1"]], 0.0)
    wp2 = w_ref[d["r_p2"]:d["r_p2"] + d["prd_h1"], 0:d["prd_h2"]]
    z = jnp.maximum(dot(z, wp2) + b_ref[3:4, 0:d["prd_h2"]], 0.0)
    wp3 = w_ref[d["r_p3"]:d["r_p3"] + d["prd_h2"], 0:d["prd_o"]]
    logits = dot(z, wp3) + b_ref[4:5, 0:d["prd_o"]]

    # softmax over dim=1 (PyTorch implicit-dim softmax on 2-D input).
    m = jnp.max(logits, axis=1, keepdims=True)
    e = jnp.exp(logits - m)
    out_ref[...] = e * pl.reciprocal(jnp.sum(e, axis=1, keepdims=True), approx=False)


# -----------------------------------------------------------------------------
# Parameter construction (deterministic, PyTorch-Linear-shaped, pre-transposed)
# -----------------------------------------------------------------------------
def init_params(key, var_len):
    d = compute_dims(var_len)
    dims = [
        ("plf_w1", d["plf_i"], d["plf_h"]), ("plf_w2", d["plf_h"], d["plf_o"]),
        ("buy_w", d["buy_i"], d["buy_o"]),
        ("sch_w", d["sch_i"], d["sch_o"]),
        ("gnr_w1", d["gnr_i"], d["gnr_h"]), ("gnr_w2", d["gnr_h"], d["gnr_o"]),
        ("usr_w", d["usr_i"], d["usr_o"]),
        ("prd_w1", d["h2_total"], d["prd_h1"]),
        ("prd_w2", d["prd_h1"], d["prd_h2"]),
        ("prd_w3", d["prd_h2"], d["prd_o"]),
    ]
    params = {}
    keys = jax.random.split(key, 2 * len(dims))
    for idx, (name, fan_in, fan_out) in enumerate(dims):
        kw, kb = keys[2 * idx], keys[2 * idx + 1]
        bound = 1.0 / jnp.sqrt(float(fan_in))
        # weight stored (in, out) i.e. transposed PyTorch (out, in)
        params[name] = jax.random.uniform(
            kw, (fan_in, fan_out), jnp.float32, -bound, bound)
        params[name.replace("_w", "_b")] = jax.random.uniform(
            kb, (1, fan_out), jnp.float32, -bound, bound)
    return params, d


def pack_params(params, d):
    """Pack all weights/biases into one block-diagonal weight slab + bias slab."""
    f32 = jnp.float32
    eye = lambda n: jnp.eye(n, dtype=f32)

    w1 = block_diag(params["plf_w1"], params["buy_w"], params["sch_w"],
                    params["gnr_w1"], params["usr_w"], eye(d["etc_i"]))
    w2 = block_diag(params["plf_w2"], eye(d["buy_o"]), eye(d["sch_o"]),
                    params["gnr_w2"], eye(d["usr_o"]), eye(d["etc_i"]))
    b1 = jnp.concatenate(
        [params["plf_b1"], params["buy_b"], params["sch_b"],
         params["gnr_b1"], params["usr_b"], jnp.zeros((1, d["etc_i"]), f32)], axis=1)
    b2 = jnp.concatenate(
        [params["plf_b2"], jnp.zeros((1, d["buy_o"]), f32),
         jnp.zeros((1, d["sch_o"]), f32), params["gnr_b2"],
         jnp.zeros((1, d["usr_o"]), f32), jnp.zeros((1, d["etc_i"]), f32)], axis=1)

    w_slab = jnp.zeros((d["slab_rows"], d["slab_cols"]), f32)
    w_slab = w_slab.at[d["r_w1"]:d["r_w1"] + d["in_total"], 0:d["h1_total"]].set(w1)
    w_slab = w_slab.at[d["r_w2"]:d["r_w2"] + d["h1_total"], 0:d["h2_total"]].set(w2)
    w_slab = w_slab.at[d["r_p1"]:d["r_p1"] + d["h2_total"], 0:d["prd_h1"]].set(params["prd_w1"])
    w_slab = w_slab.at[d["r_p2"]:d["r_p2"] + d["prd_h1"], 0:d["prd_h2"]].set(params["prd_w2"])
    w_slab = w_slab.at[d["r_p3"]:d["r_p3"] + d["prd_h2"], 0:d["prd_o"]].set(params["prd_w3"])

    b_slab = jnp.zeros((8, d["slab_cols"]), f32)   # 8 rows = sublane multiple
    b_slab = b_slab.at[0, 0:d["h1_total"]].set(b1[0])
    b_slab = b_slab.at[1, 0:d["h2_total"]].set(b2[0])
    b_slab = b_slab.at[2, 0:d["prd_h1"]].set(params["prd_b1"][0])
    b_slab = b_slab.at[3, 0:d["prd_h2"]].set(params["prd_b2"][0])
    b_slab = b_slab.at[4, 0:d["prd_o"]].set(params["prd_b3"][0])
    return w_slab, b_slab


# -----------------------------------------------------------------------------
# Wrapper
# -----------------------------------------------------------------------------
def make_net_forward(dims):
    kernel = functools.partial(_net_kernel, dims=dims)

    @jax.jit
    def forward(plf, buy, sch, gnr, usr, etc, w_slab, b_slab):
        x = jnp.concatenate([plf, buy, sch, gnr, usr, etc], axis=1)
        batch = x.shape[0]
        return pl.pallas_call(
            kernel,
            out_shape=jax.ShapeDtypeStruct((batch, dims["prd_o"]), jnp.float32),
            in_specs=[pl.BlockSpec(memory_space=pltpu.MemorySpace.VMEM)] * 3,
            out_specs=pl.BlockSpec(memory_space=pltpu.MemorySpace.VMEM),
        )(x, w_slab, b_slab)

    return forward


# -----------------------------------------------------------------------------
# Pure-JAX reference (unpacked parameters) for sanity checking
# -----------------------------------------------------------------------------
def net_ref(plf, buy, sch, gnr, usr, etc, p):
    relu = lambda v: jnp.maximum(v, 0.0)
    lin = lambda x, w, b: x @ w + b
    plf = relu(lin(relu(lin(plf, p["plf_w1"], p["plf_b1"])), p["plf_w2"], p["plf_b2"]))
    buy = lin(buy, p["buy_w"], p["buy_b"])
    sch = lin(sch, p["sch_w"], p["sch_b"])
    gnr = relu(lin(relu(lin(gnr, p["gnr_w1"], p["gnr_b1"])), p["gnr_w2"], p["gnr_b2"]))
    usr = lin(usr, p["usr_w"], p["usr_b"])
    x = jnp.concatenate([plf, buy, sch, gnr, usr, etc], axis=1)
    x = relu(lin(x, p["prd_w1"], p["prd_b1"]))
    x = relu(lin(x, p["prd_w2"], p["prd_b2"]))
    logits = lin(x, p["prd_w3"], p["prd_b3"])
    return jax.nn.softmax(logits, axis=1)


if __name__ == "__main__":
    # varLen = [plfDimI, buyDimI, schDimI, gnrDimI, usrDimI, etcDimI]
    var_len = [6, 8, 5, 9, 7, 4]
    batch = 8

    root = jax.random.PRNGKey(0)
    k_param, k_plf, k_buy, k_sch, k_gnr, k_usr, k_etc = jax.random.split(root, 7)

    params, dims = init_params(k_param, var_len)
    w_slab, b_slab = pack_params(params, dims)       # packed once, outside kernel
    net_forward = make_net_forward(dims)

    plf = jax.random.normal(k_plf, (batch, var_len[0]), jnp.float32)
    buy = jax.random.normal(k_buy, (batch, var_len[1]), jnp.float32)
    sch = jax.random.normal(k_sch, (batch, var_len[2]), jnp.float32)
    gnr = jax.random.normal(k_gnr, (batch, var_len[3]), jnp.float32)
    usr = jax.random.normal(k_usr, (batch, var_len[4]), jnp.float32)
    etc = jax.random.normal(k_etc, (batch, var_len[5]), jnp.float32)

    out = net_forward(plf, buy, sch, gnr, usr, etc, w_slab, b_slab)
    out = jax.block_until_ready(out)

    ref = net_ref(plf, buy, sch, gnr, usr, etc, params)
    assert out.shape == (batch, dims["prd_o"])
    assert jnp.allclose(out, ref, atol=1e-5, rtol=1e-4), (out, ref)
    # rows of a softmax must sum to 1
    assert jnp.allclose(jnp.sum(out, axis=1), 1.0, atol=1e-5)

    print("KERNEL_OK")
</pallas_src>

<mosaic_0001>
module attributes {stable_mosaic.version = 11 : i64} {
  func.func @_net_kernel(%arg0: memref<8x39xf32, #tpu.memory_space<vmem>>, %arg1: memref<136x37xf32, #tpu.memory_space<vmem>>, %arg2: memref<8x37xf32, #tpu.memory_space<vmem>>, %arg3: memref<8x2xf32, #tpu.memory_space<vmem>>) attributes {dimension_semantics = [], scalar_prefetch = 0 : i64, scratch_operands = 0 : i64, tpu.core_type = #tpu.core_type<tc>} {
    %c0 = arith.constant 0 : index
    %c0_0 = arith.constant 0 : index
    %0 = vector.load %arg0[%c0, %c0_0] : memref<8x39xf32, #tpu.memory_space<vmem>>, vector<8x39xf32>
    %c0_1 = arith.constant 0 : index
    %c0_2 = arith.constant 0 : index
    %1 = vector.load %arg1[%c0_1, %c0_2] : memref<136x37xf32, #tpu.memory_space<vmem>>, vector<39x37xf32>
    %cst = arith.constant dense<0.000000e+00> : vector<8x37xf32>
    %2 = tpu.matmul %0, %1, %cst {dimension_numbers = #tpu.dot_dimension_numbers<[1], [0], [0], [1], [0, 0, 1, 1], [], []>} : vector<8x39xf32>, vector<39x37xf32>, vector<8x37xf32> -> vector<8x37xf32>
    %c0_3 = arith.constant 0 : index
    %c0_4 = arith.constant 0 : index
    %3 = vector.load %arg2[%c0_3, %c0_4] : memref<8x37xf32, #tpu.memory_space<vmem>>, vector<1x37xf32>
    %4 = vector.broadcast %3 : vector<1x37xf32> to vector<8x37xf32>
    %5 = arith.addf %2, %4 : vector<8x37xf32>
    %6 = tpu.iota {dimensions = array<i32: 1>} : vector<1x37xi32>
    %c4_i32 = arith.constant 4 : i32
    %7 = vector.broadcast %c4_i32 : i32 to vector<1x37xi32>
    %8 = arith.cmpi slt, %6, %7 : vector<1x37xi32>
    %c17_i32 = arith.constant 17 : i32
    %9 = vector.broadcast %c17_i32 : i32 to vector<1x37xi32>
    %10 = arith.cmpi sge, %6, %9 : vector<1x37xi32>
    %c29_i32 = arith.constant 29 : i32
    %11 = vector.broadcast %c29_i32 : i32 to vector<1x37xi32>
    %12 = arith.cmpi slt, %6, %11 : vector<1x37xi32>
    %13 = arith.andi %10, %12 : vector<1x37xi1>
    %14 = arith.ori %8, %13 : vector<1x37xi1>
    %cst_5 = arith.constant 0.000000e+00 : f32
    %15 = vector.broadcast %cst_5 : f32 to vector<8x37xf32>
    %16 = arith.maximumf %5, %15 : vector<8x37xf32>
    %17 = vector.shape_cast %14 : vector<1x37xi1> to vector<1x37xi1>
    %18 = vector.broadcast %17 : vector<1x37xi1> to vector<8x37xi1>
    %19 = arith.select %18, %16, %5 : vector<8x37xi1>, vector<8x37xf32>
    %c40 = arith.constant 40 : index
    %c0_6 = arith.constant 0 : index
    %20 = vector.load %arg1[%c40, %c0_6] : memref<136x37xf32, #tpu.memory_space<vmem>>, vector<37x29xf32>
    %cst_7 = arith.constant dense<0.000000e+00> : vector<8x29xf32>
    %21 = tpu.matmul %19, %20, %cst_7 {dimension_numbers = #tpu.dot_dimension_numbers<[1], [0], [0], [1], [0, 0, 1, 1], [], []>} : vector<8x37xf32>, vector<37x29xf32>, vector<8x29xf32> -> vector<8x29xf32>
    %c1 = arith.constant 1 : index
    %c0_8 = arith.constant 0 : index
    %22 = vector.load %arg2[%c1, %c0_8] : memref<8x37xf32, #tpu.memory_space<vmem>>, vector<1x29xf32>
    %23 = vector.broadcast %22 : vector<1x29xf32> to vector<8x29xf32>
    %24 = arith.addf %21, %23 : vector<8x29xf32>
    %25 = tpu.iota {dimensions = array<i32: 1>} : vector<1x29xi32>
    %c2_i32 = arith.constant 2 : i32
    %26 = vector.broadcast %c2_i32 : i32 to vector<1x29xi32>
    %27 = arith.cmpi slt, %25, %26 : vector<1x29xi32>
    %c15_i32 = arith.constant 15 : i32
    %28 = vector.broadcast %c15_i32 : i32 to vector<1x29xi32>
    %29 = arith.cmpi sge, %25, %28 : vector<1x29xi32>
    %c21_i32 = arith.constant 21 : i32
    %30 = vector.broadcast %c21_i32 : i32 to vector<1x29xi32>
    %31 = arith.cmpi slt, %25, %30 : vector<1x29xi32>
    %32 = arith.andi %29, %31 : vector<1x29xi1>
    %33 = arith.ori %27, %32 : vector<1x29xi1>
    %cst_9 = arith.constant 0.000000e+00 : f32
    %34 = vector.broadcast %cst_9 : f32 to vector<8x29xf32>
    %35 = arith.maximumf %24, %34 : vector<8x29xf32>
    %36 = vector.shape_cast %33 : vector<1x29xi1> to vector<1x29xi1>
    %37 = vector.broadcast %36 : vector<1x29xi1> to vector<8x29xi1>
    %38 = arith.select %37, %35, %24 : vector<8x29xi1>, vector<8x29xf32>
    %c80 = arith.constant 80 : index
    %c0_10 = arith.constant 0 : index
    %39 = vector.load %arg1[%c80, %c0_10] : memref<136x37xf32, #tpu.memory_space<vmem>>, vector<29x15xf32>
    %cst_11 = arith.constant dense<0.000000e+00> : vector<8x15xf32>
    %40 = tpu.matmul %38, %39, %cst_11 {dimension_numbers = #tpu.dot_dimension_numbers<[1], [0], [0], [1], [0, 0, 1, 1], [], []>} : vector<8x29xf32>, vector<29x15xf32>, vector<8x15xf32> -> vector<8x15xf32>
    %c2 = arith.constant 2 : index
    %c0_12 = arith.constant 0 : index
    %41 = vector.load %arg2[%c2, %c0_12] : memref<8x37xf32, #tpu.memory_space<vmem>>, vector<1x15xf32>
    %42 = vector.broadcast %41 : vector<1x15xf32> to vector<8x15xf32>
    %43 = arith.addf %40, %42 : vector<8x15xf32>
    %cst_13 = arith.constant 0.000000e+00 : f32
    %44 = vector.broadcast %cst_13 : f32 to vector<8x15xf32>
    %45 = arith.maximumf %43, %44 : vector<8x15xf32>
    %c112 = arith.constant 112 : index
    %c0_14 = arith.constant 0 : index
    %46 = vector.load %arg1[%c112, %c0_14] : memref<136x37xf32, #tpu.memory_space<vmem>>, vector<15x8xf32>
    %cst_15 = arith.constant dense<0.000000e+00> : vector<8x8xf32>
    %47 = tpu.matmul %45, %46, %cst_15 {dimension_numbers = #tpu.dot_dimension_numbers<[1], [0], [0], [1], [0, 0, 1, 1], [], []>} : vector<8x15xf32>, vector<15x8xf32>, vector<8x8xf32> -> vector<8x8xf32>
    %c3 = arith.constant 3 : index
    %c0_16 = arith.constant 0 : index
    %48 = vector.load %arg2[%c3, %c0_16] : memref<8x37xf32, #tpu.memory_space<vmem>>, vector<1x8xf32>
    %49 = vector.broadcast %48 : vector<1x8xf32> to vector<8x8xf32>
    %50 = arith.addf %47, %49 : vector<8x8xf32>
    %cst_17 = arith.constant 0.000000e+00 : f32
    %51 = vector.broadcast %cst_17 : f32 to vector<8x8xf32>
    %52 = arith.maximumf %50, %51 : vector<8x8xf32>
    %c128 = arith.constant 128 : index
    %c0_18 = arith.constant 0 : index
    %53 = vector.load %arg1[%c128, %c0_18] : memref<136x37xf32, #tpu.memory_space<vmem>>, vector<8x2xf32>
    %cst_19 = arith.constant dense<0.000000e+00> : vector<8x2xf32>
    %54 = tpu.matmul %52, %53, %cst_19 {dimension_numbers = #tpu.dot_dimension_numbers<[1], [0], [0], [1], [0, 0, 1, 1], [], []>} : vector<8x8xf32>, vector<8x2xf32>, vector<8x2xf32> -> vector<8x2xf32>
    %c4 = arith.constant 4 : index
    %c0_20 = arith.constant 0 : index
    %55 = vector.load %arg2[%c4, %c0_20] : memref<8x37xf32, #tpu.memory_space<vmem>>, vector<1x2xf32>
    %56 = vector.broadcast %55 : vector<1x2xf32> to vector<8x2xf32>
    %57 = arith.addf %54, %56 : vector<8x2xf32>
    %cst_21 = arith.constant dense<0xFF800000> : vector<8xf32>
    %58 = vector.multi_reduction <maximumf>, %57, %cst_21 [1] : vector<8x2xf32> to vector<8xf32>
    %59 = vector.shape_cast %58 : vector<8xf32> to vector<8x1xf32>
    %60 = vector.broadcast %59 : vector<8x1xf32> to vector<8x2xf32>
    %61 = arith.subf %57, %60 : vector<8x2xf32>
    %62 = math.exp %61 : vector<8x2xf32>
    %cst_22 = arith.constant dense<0.000000e+00> : vector<8xf32>
    %63 = vector.multi_reduction <add>, %62, %cst_22 [1] : vector<8x2xf32> to vector<8xf32>
    %64 = vector.shape_cast %63 : vector<8xf32> to vector<8x1xf32>
    %65 = tpu.reciprocal %64 : vector<8x1xf32> -> vector<8x1xf32>
    %66 = vector.broadcast %65 : vector<8x1xf32> to vector<8x2xf32>
    %67 = arith.mulf %62, %66 : vector<8x2xf32>
    %c0_23 = arith.constant 0 : index
    %c0_24 = arith.constant 0 : index
    %68 = vector.load %arg3[%c0_23, %c0_24] : memref<8x2xf32, #tpu.memory_space<vmem>>, vector<8x2xf32>
    tpu.vector_store %arg3[%c0_23, %c0_24], %67 {strides = array<i32>} : memref<8x2xf32, #tpu.memory_space<vmem>>, vector<8x2xf32>,
    return
  }
}

</mosaic_0001>

<llo_original>
// kernel: forward.1
$region0: #{forward.1}
  #allocation0 [shape = 'u32[]', space=smem, size = 0x4, offset = 0x4, fixed_abs, tag = 'smem constant byte address 0x4 - core index']
  #allocation1 [shape = 'u32[144,128]{1,0:T(1,128)}', space=vmem, size = 0x12000, scoped, tag = 'internal scratch']
  %s0 = inlined_call_operand.vmem [shape: f32[8,39], index: 0, kind: input, shape index: {}]
  %s1 = inlined_call_operand.vmem [shape: f32[136,37], index: 1, kind: input, shape index: {}]
  %s2 = inlined_call_operand.vmem [shape: f32[8,37], index: 2, kind: input, shape index: {}]
  %s3 = inlined_call_operand.vmem [shape: f32[8,2], index: 3, kind: output, shape index: {}]
  %s4 = sld [smem:[#allocation0]]
  $region22: #{forward.1} parent=0
    _
  %s6 = ssub.s32 1, %s4
  %s7 = scalar_select 0, %s6, %s4
  // Predicated region
  $region2: #{forward.1} parent=0 // pred_check
    _
  $region3: #{forward.1} parent=0 // pred_check_branch
    %9 = sbr.rel (0) target = $region5
  $region4: #{forward.1} parent=0 // pred_region
    _
  $region5: #{forward.1} parent=0 // pred_fallthru
    _
  // Predicated region
  $region6: #{forward.1} parent=0 // pred_check
    _
  $region7: #{forward.1} parent=0 // pred_check_branch
    %11 = sbr.rel (0) target = $region9
  $region8: #{forward.1} parent=0 // pred_region
    _
  $region9: #{forward.1} parent=0 // pred_fallthru
    _
  // Predicated region
  $region10: #{forward.1} parent=0 // pred_check
    _
  $region11: #{forward.1} parent=0 // pred_check_branch
    %13 = sbr.rel (0) target = $region13
  $region12: #{forward.1} parent=0 // pred_region
    _
  $region13: #{forward.1} parent=0 // pred_fallthru
    _
  %v14 = vld [vmem:[%s0] sm:$0xff]
  %v15 = vld [vmem:[%s1] sm:$0xff]
  %v16 = vld [vmem:[%s1 + $0x8] sm:$0xff]
  %v17 = vld [vmem:[%s1 + $0x10] sm:$0xff]
  %v18 = vld [vmem:[%s1 + $0x18] sm:$0xff]
  %v19 = vld [vmem:[%s1 + $0x20] sm:$0x7f]
  %v20 = vld [vmem:[%s2] sm:$0x1]
  %v21 = vlaneseq
  %v22 = vshrl.u32 %v21, 7
  %v23 = vsub.s32 0, %v22
  %v24 = vrot.slane %v20, %v23
  %vm25 = vcmask 318464
  %v27 = vsel %vm25, %v14, 0
  %vm29 = vcmask 1046528
  %v31 = vsel %vm29, %v19, 0
  %33 = vmatprep.subr.mxu0 0.0
  %34 = vmatpush1.msra.mxu0 %v15
  %35 = vmatprep.subr.mxu0 0.0
  %36 = vmatpush1.msra.mxu0 %v16
  %37 = vmatprep.subr.mxu0 0.0
  %38 = vmatpush1.msra.mxu0 %v17
  %39 = vmatprep.subr.mxu0 0.0
  %40 = vmatpush1.msra.mxu0 %v18
  %41 = vmatprep.subr.mxu0 0.0
  %42 = vmatpush1.msra.mxu0 %v31
  %43 = vmatprep.subr.mxu0 0.0
  %44 = vmatpush1.msra.mxu0 0.0
  %45 = vmatprep.subr.mxu0 0.0
  %46 = vmatpush1.msra.mxu0 0.0
  %47 = vmatprep.subr.mxu0 0.0
  %48 = vmatpush1.msra.mxu0 0.0
  %49 = vmatprep.subr.mxu0 0.0
  %50 = vmatpush1.msra.mxu0 0.0
  %51 = vmatprep.subr.mxu0 0.0
  %52 = vmatpush1.msra.mxu0 0.0
  %53 = vmatprep.subr.mxu0 0.0
  %54 = vmatpush1.msra.mxu0 0.0
  %55 = vmatprep.subr.mxu0 0.0
  %56 = vmatpush1.msra.mxu0 0.0
  %57 = vmatprep.subr.mxu0 0.0
  %58 = vmatpush1.msra.mxu0 0.0
  %59 = vmatprep.subr.mxu0 0.0
  %60 = vmatpush1.msra.mxu0 0.0
  %61 = vmatprep.subr.mxu0 0.0
  %62 = vmatpush1.msra.mxu0 0.0
  %63 = vmatprep.subr.mxu0 0.0
  %64 = vmatpush1.msra.mxu0 0.0
  %65 = vmatprep.subr.mxu0 0.0
  %66 = vmatpush1.msra.mxu0 0.0
  %67 = vmatprep.subr.mxu0 0.0
  %68 = vmatpush1.msra.mxu0 0.0
  %69 = vmatprep.subr.mxu0 0.0
  %70 = vmatpush1.msra.mxu0 0.0
  %71 = vmatprep.subr.mxu0 0.0
  %72 = vmatpush1.msra.mxu0 0.0
  %73 = vmatprep.subr.mxu0 0.0
  %74 = vmatpush1.msra.mxu0 0.0
  %75 = vmatprep.subr.mxu0 0.0
  %76 = vmatpush1.msra.mxu0 0.0
  %77 = vmatprep.subr.mxu0 0.0
  %78 = vmatpush1.msra.mxu0 0.0
  %79 = vmatprep.subr.mxu0 0.0
  %80 = vmatpush1.msra.mxu0 0.0
  %81 = vmatprep.subr.mxu0 0.0
  %82 = vmatpush1.msra.mxu0 0.0
  %83 = vmatprep.subr.mxu0 0.0
  %84 = vmatpush1.msra.mxu0 0.0
  %85 = vmatprep.subr.mxu0 0.0
  %86 = vmatpush1.msra.mxu0 0.0
  %87 = vmatprep.subr.mxu0 0.0
  %88 = vmatpush1.msra.mxu0 0.0
  %89 = vmatprep.subr.mxu0 0.0
  %90 = vmatpush1.msra.mxu0 0.0
  %91 = vmatprep.subr.mxu0 0.0
  %92 = vmatpush1.msra.mxu0 0.0
  %93 = vmatprep.subr.mxu0 0.0
  %94 = vmatpush1.msra.mxu0 0.0
  %95 = vmatprep.subr.mxu0 0.0
  %96 = vmatpush1.msra.mxu0 0.0
  %97 = vmatprep.mubr.f32.mxu0 0.0
  %98 = vmatmul.mubr.f32.gmra.mrb[0].mxu0 %v27
  %v99 = vpop.f32.mrb[0].mxu0
  %v100 = vadd.f32 %v24, %v99
  %v101 = vpop.f32.mrb[0].mxu0
  %102 = vdwg.mxu0
  %v103 = vlaneseq
  %v104 = vand.u32 %v103, 127
  %vm105 = vcmp.lt.s32.totalorder %v104, 4
  %vm106 = vcmp.ge.s32.totalorder %v104, 17
  %vm107 = vcmp.lt.s32.totalorder %v104, 29
  %vm108 = vmand %vm106, %vm107
  %vm109 = vmor %vm105, %vm108
  %v110 = vmax.f32 %v100, 0.0
  %v111 = vsel %vm109, 1, 0
  %vm112 = vcmp.eq.s32.totalorder %v111, 1
  %v113 = vsel %vm112, %v110, %v100
  %v114 = vld [vmem:[%s1 + $0x28] sm:$0xff]
  %v115 = vld [vmem:[%s1 + $0x30] sm:$0xff]
  %v116 = vld [vmem:[%s1 + $0x38] sm:$0xff]
  %v117 = vld [vmem:[%s1 + $0x40] sm:$0xff]
  %v118 = vld [vmem:[%s1 + $0x48] sm:$0x1f]
  %v119 = vld [vmem:[%s2 + $0x1] sm:$0x1]
  %v120 = vlaneseq
  %v121 = vshrl.u32 %v120, 7
  %v122 = vsub.s32 0, %v121
  %v123 = vrot.slane %v119, %v122
  %vm124 = vcmask 302080
  %v126 = vsel %vm124, %v113, 0
  %vm128 = vcmask 1044480
  %v130 = vsel %vm128, %v118, 0
  %132 = vmatprep.subr.mxu0 0.0
  %133 = vmatpush1.msra.mxu0 %v114
  %134 = vmatprep.subr.mxu0 0.0
  %135 = vmatpush1.msra.mxu0 %v115
  %136 = vmatprep.subr.mxu0 0.0
  %137 = vmatpush1.msra.mxu0 %v116
  %138 = vmatprep.subr.mxu0 0.0
  %139 = vmatpush1.msra.mxu0 %v117
  %140 = vmatprep.subr.mxu0 0.0
  %141 = vmatpush1.msra.mxu0 %v130
  %142 = vmatprep.subr.mxu0 0.0
  %143 = vmatpush1.msra.mxu0 0.0
  %144 = vmatprep.subr.mxu0 0.0
  %145 = vmatpush1.msra.mxu0 0.0
  %146 = vmatprep.subr.mxu0 0.0
  %147 = vmatpush1.msra.mxu0 0.0
  %148 = vmatprep.subr.mxu0 0.0
  %149 = vmatpush1.msra.mxu0 0.0
  %150 = vmatprep.subr.mxu0 0.0
  %151 = vmatpush1.msra.mxu0 0.0
  %152 = vmatprep.subr.mxu0 0.0
  %153 = vmatpush1.msra.mxu0 0.0
  %154 = vmatprep.subr.mxu0 0.0
  %155 = vmatpush1.msra.mxu0 0.0
  %156 = vmatprep.subr.mxu0 0.0
  %157 = vmatpush1.msra.mxu0 0.0
  %158 = vmatprep.subr.mxu0 0.0
  %159 = vmatpush1.msra.mxu0 0.0
  %160 = vmatprep.subr.mxu0 0.0
  %161 = vmatpush1.msra.mxu0 0.0
  %162 = vmatprep.subr.mxu0 0.0
  %163 = vmatpush1.msra.mxu0 0.0
  %164 = vmatprep.subr.mxu0 0.0
  %165 = vmatpush1.msra.mxu0 0.0
  %166 = vmatprep.subr.mxu0 0.0
  %167 = vmatpush1.msra.mxu0 0.0
  %168 = vmatprep.subr.mxu0 0.0
  %169 = vmatpush1.msra.mxu0 0.0
  %170 = vmatprep.subr.mxu0 0.0
  %171 = vmatpush1.msra.mxu0 0.0
  %172 = vmatprep.subr.mxu0 0.0
  %173 = vmatpush1.msra.mxu0 0.0
  %174 = vmatprep.subr.mxu0 0.0
  %175 = vmatpush1.msra.mxu0 0.0
  %176 = vmatprep.subr.mxu0 0.0
  %177 = vmatpush1.msra.mxu0 0.0
  %178 = vmatprep.subr.mxu0 0.0
  %179 = vmatpush1.msra.mxu0 0.0
  %180 = vmatprep.subr.mxu0 0.0
  %181 = vmatpush1.msra.mxu0 0.0
  %182 = vmatprep.subr.mxu0 0.0
  %183 = vmatpush1.msra.mxu0 0.0
  %184 = vmatprep.subr.mxu0 0.0
  %185 = vmatpush1.msra.mxu0 0.0
  %186 = vmatprep.subr.mxu0 0.0
  %187 = vmatpush1.msra.mxu0 0.0
  %188 = vmatprep.subr.mxu0 0.0
  %189 = vmatpush1.msra.mxu0 0.0
  %190 = vmatprep.subr.mxu0 0.0
  %191 = vmatpush1.msra.mxu0 0.0
  %192 = vmatprep.subr.mxu0 0.0
  %193 = vmatpush1.msra.mxu0 0.0
  %194 = vmatprep.subr.mxu0 0.0
  %195 = vmatpush1.msra.mxu0 0.0
  %196 = vmatprep.mubr.f32.mxu0 0.0
  %197 = vmatmul.mubr.f32.gmra.mrb[0].mxu0 %v126
  %v198 = vpop.f32.mrb[0].mxu0
  %v199 = vadd.f32 %v123, %v198
  %v200 = vpop.f32.mrb[0].mxu0
  %201 = vdwg.mxu0
  %vm202 = vcmp.lt.s32.totalorder %v104, 2
  %vm203 = vcmp.ge.s32.totalorder %v104, 15
  %vm204 = vcmp.lt.s32.totalorder %v104, 21
  %vm205 = vmand %vm203, %vm204
  %vm206 = vmor %vm202, %vm205
  %v207 = vmax.f32 %v199, 0.0
  %v208 = vsel %vm206, 1, 0
  %vm209 = vcmp.eq.s32.totalorder %v208, 1
  %v210 = vsel %vm209, %v207, %v199
  %v211 = vld [vmem:[%s1 + $0x50] sm:$0xff]
  %v212 = vld [vmem:[%s1 + $0x58] sm:$0xff]
  %v213 = vld [vmem:[%s1 + $0x60] sm:$0xff]
  %v214 = vld [vmem:[%s1 + $0x68] sm:$0x1f]
  %v215 = vld [vmem:[%s2 + $0x2] sm:$0x1]
  %v216 = vlaneseq
  %v217 = vshrl.u32 %v216, 7
  %v218 = vsub.s32 0, %v217
  %v219 = vrot.slane %v215, %v218
  %vm220 = vcmask 236544
  %v222 = vsel %vm220, %v210, 0
  %v225 = vsel %vm128, %v214, 0
  %227 = vmatprep.subr.mxu0 0.0
  %228 = vmatpush1.msra.mxu0 %v211
  %229 = vmatprep.subr.mxu0 0.0
  %230 = vmatpush1.msra.mxu0 %v212
  %231 = vmatprep.subr.mxu0 0.0
  %232 = vmatpush1.msra.mxu0 %v213
  %233 = vmatprep.subr.mxu0 0.0
  %234 = vmatpush1.msra.mxu0 %v225
  %235 = vmatprep.subr.mxu0 0.0
  %236 = vmatpush1.msra.mxu0 0.0
  %237 = vmatprep.subr.mxu0 0.0
  %238 = vmatpush1.msra.mxu0 0.0
  %239 = vmatprep.subr.mxu0 0.0
  %240 = vmatpush1.msra.mxu0 0.0
  %241 = vmatprep.subr.mxu0 0.0
  %242 = vmatpush1.msra.mxu0 0.0
  %243 = vmatprep.subr.mxu0 0.0
  %244 = vmatpush1.msra.mxu0 0.0
  %245 = vmatprep.subr.mxu0 0.0
  %246 = vmatpush1.msra.mxu0 0.0
  %247 = vmatprep.subr.mxu0 0.0
  %248 = vmatpush1.msra.mxu0 0.0
  %249 = vmatprep.subr.mxu0 0.0
  %250 = vmatpush1.msra.mxu0 0.0
  %251 = vmatprep.subr.mxu0 0.0
  %252 = vmatpush1.msra.mxu0 0.0
  %253 = vmatprep.subr.mxu0 0.0
  %254 = vmatpush1.msra.mxu0 0.0
  %255 = vmatprep.subr.mxu0 0.0
  %256 = vmatpush1.msra.mxu0 0.0
  %257 = vmatprep.subr.mxu0 0.0
  %258 = vmatpush1.msra.mxu0 0.0
  %259 = vmatprep.subr.mxu0 0.0
  %260 = vmatpush1.msra.mxu0 0.0
  %261 = vmatprep.subr.mxu0 0.0
  %262 = vmatpush1.msra.mxu0 0.0
  %263 = vmatprep.subr.mxu0 0.0
  %264 = vmatpush1.msra.mxu0 0.0
  %265 = vmatprep.subr.mxu0 0.0
  %266 = vmatpush1.msra.mxu0 0.0
  %267 = vmatprep.subr.mxu0 0.0
  %268 = vmatpush1.msra.mxu0 0.0
  %269 = vmatprep.subr.mxu0 0.0
  %270 = vmatpush1.msra.mxu0 0.0
  %271 = vmatprep.subr.mxu0 0.0
  %272 = vmatpush1.msra.mxu0 0.0
  %273 = vmatprep.subr.mxu0 0.0
  %274 = vmatpush1.msra.mxu0 0.0
  %275 = vmatprep.subr.mxu0 0.0
  %276 = vmatpush1.msra.mxu0 0.0
  %277 = vmatprep.subr.mxu0 0.0
  %278 = vmatpush1.msra.mxu0 0.0
  %279 = vmatprep.subr.mxu0 0.0
  %280 = vmatpush1.msra.mxu0 0.0
  %281 = vmatprep.subr.mxu0 0.0
  %282 = vmatpush1.msra.mxu0 0.0
  %283 = vmatprep.subr.mxu0 0.0
  %284 = vmatpush1.msra.mxu0 0.0
  %285 = vmatprep.subr.mxu0 0.0
  %286 = vmatpush1.msra.mxu0 0.0
  %287 = vmatprep.subr.mxu0 0.0
  %288 = vmatpush1.msra.mxu0 0.0
  %289 = vmatprep.subr.mxu0 0.0
  %290 = vmatpush1.msra.mxu0 0.0
  %291 = vmatprep.mubr.f32.mxu0 0.0
  %292 = vmatmul.mubr.f32.gmra.mrb[0].mxu0 %v222
  %v293 = vpop.f32.mrb[0].mxu0
  %v294 = vadd.f32 %v219, %v293
  %v295 = vpop.f32.mrb[0].mxu0
  %296 = vdwg.mxu0
  %v297 = vmax.f32 %v294, 0.0
  %v298 = vld [vmem:[%s1 + $0x70] sm:$0xff]
  %v299 = vld [vmem:[%s1 + $0x78] sm:$0x7f]
  %v300 = vld [vmem:[%s2 + $0x3] sm:$0x1]
  %v301 = vlaneseq
  %v302 = vshrl.u32 %v301, 7
  %v303 = vsub.s32 0, %v302
  %v304 = vrot.slane %v300, %v303
  %vm305 = vcmask 121856
  %v307 = vsel %vm305, %v297, 0
  %v310 = vsel %vm29, %v299, 0
  %312 = vmatprep.subr.mxu0 0.0
  %313 = vmatpush1.msra.mxu0 %v298
  %314 = vmatprep.subr.mxu0 0.0
  %315 = vmatpush1.msra.mxu0 %v310
  %316 = vmatprep.subr.mxu0 0.0
  %317 = vmatpush1.msra.mxu0 0.0
  %318 = vmatprep.subr.mxu0 0.0
  %319 = vmatpush1.msra.mxu0 0.0
  %320 = vmatprep.subr.mxu0 0.0
  %321 = vmatpush1.msra.mxu0 0.0
  %322 = vmatprep.subr.mxu0 0.0
  %323 = vmatpush1.msra.mxu0 0.0
  %324 = vmatprep.subr.mxu0 0.0
  %325 = vmatpush1.msra.mxu0 0.0
  %326 = vmatprep.subr.mxu0 0.0
  %327 = vmatpush1.msra.mxu0 0.0
  %328 = vmatprep.subr.mxu0 0.0
  %329 = vmatpush1.msra.mxu0 0.0
  %330 = vmatprep.subr.mxu0 0.0
  %331 = vmatpush1.msra.mxu0 0.0
  %332 = vmatprep.subr.mxu0 0.0
  %333 = vmatpush1.msra.mxu0 0.0
  %334 = vmatprep.subr.mxu0 0.0
  %335 = vmatpush1.msra.mxu0 0.0
  %336 = vmatprep.subr.mxu0 0.0
  %337 = vmatpush1.msra.mxu0 0.0
  %338 = vmatprep.subr.mxu0 0.0
  %339 = vmatpush1.msra.mxu0 0.0
  %340 = vmatprep.subr.mxu0 0.0
  %341 = vmatpush1.msra.mxu0 0.0
  %342 = vmatprep.subr.mxu0 0.0
  %343 = vmatpush1.msra.mxu0 0.0
  %344 = vmatprep.subr.mxu0 0.0
  %345 = vmatpush1.msra.mxu0 0.0
  %346 = vmatprep.subr.mxu0 0.0
  %347 = vmatpush1.msra.mxu0 0.0
  %348 = vmatprep.subr.mxu0 0.0
  %349 = vmatpush1.msra.mxu0 0.0
  %350 = vmatprep.subr.mxu0 0.0
  %351 = vmatpush1.msra.mxu0 0.0
  %352 = vmatprep.subr.mxu0 0.0
  %353 = vmatpush1.msra.mxu0 0.0
  %354 = vmatprep.subr.mxu0 0.0
  %355 = vmatpush1.msra.mxu0 0.0
  %356 = vmatprep.subr.mxu0 0.0
  %357 = vmatpush1.msra.mxu0 0.0
  %358 = vmatprep.subr.mxu0 0.0
  %359 = vmatpush1.msra.mxu0 0.0
  %360 = vmatprep.subr.mxu0 0.0
  %361 = vmatpush1.msra.mxu0 0.0
  %362 = vmatprep.subr.mxu0 0.0
  %363 = vmatpush1.msra.mxu0 0.0
  %364 = vmatprep.subr.mxu0 0.0
  %365 = vmatpush1.msra.mxu0 0.0
  %366 = vmatprep.subr.mxu0 0.0
  %367 = vmatpush1.msra.mxu0 0.0
  %368 = vmatprep.subr.mxu0 0.0
  %369 = vmatpush1.msra.mxu0 0.0
  %370 = vmatprep.subr.mxu0 0.0
  %371 = vmatpush1.msra.mxu0 0.0
  %372 = vmatprep.subr.mxu0 0.0
  %373 = vmatpush1.msra.mxu0 0.0
  %374 = vmatprep.subr.mxu0 0.0
  %375 = vmatpush1.msra.mxu0 0.0
  %376 = vmatprep.mubr.f32.mxu0 0.0
  %377 = vmatmul.mubr.f32.gmra.mrb[0].mxu0 %v307
  %v378 = vpop.f32.mrb[0].mxu0
  %v379 = vadd.f32 %v304, %v378
  %v380 = vpop.f32.mrb[0].mxu0
  %381 = vdwg.mxu0
  %v382 = vmax.f32 %v379, 0.0
  %v383 = vld [vmem:[%s1 + $0x80] sm:$0xff]
  %v384 = vld [vmem:[%s2 + $0x4] sm:$0x1]
  %v385 = vlaneseq
  %v386 = vshrl.u32 %v385, 7
  %v387 = vsub.s32 0, %v386
  %v388 = vrot.slane %v384, %v387
  %vm389 = vcmask 64512
  %v391 = vsel %vm389, %v382, 0
  %393 = vmatprep.subr.mxu0 0.0
  %394 = vmatpush1.msra.mxu0 %v383
  %395 = vmatprep.subr.mxu0 0.0
  %396 = vmatpush1.msra.mxu0 0.0
  %397 = vmatprep.subr.mxu0 0.0
  %398 = vmatpush1.msra.mxu0 0.0
  %399 = vmatprep.subr.mxu0 0.0
  %400 = vmatpush1.msra.mxu0 0.0
  %401 = vmatprep.subr.mxu0 0.0
  %402 = vmatpush1.msra.mxu0 0.0
  %403 = vmatprep.subr.mxu0 0.0
  %404 = vmatpush1.msra.mxu0 0.0
  %405 = vmatprep.subr.mxu0 0.0
  %406 = vmatpush1.msra.mxu0 0.0
  %407 = vmatprep.subr.mxu0 0.0
  %408 = vmatpush1.msra.mxu0 0.0
  %409 = vmatprep.subr.mxu0 0.0
  %410 = vmatpush1.msra.mxu0 0.0
  %411 = vmatprep.subr.mxu0 0.0
  %412 = vmatpush1.msra.mxu0 0.0
  %413 = vmatprep.subr.mxu0 0.0
  %414 = vmatpush1.msra.mxu0 0.0
  %415 = vmatprep.subr.mxu0 0.0
  %416 = vmatpush1.msra.mxu0 0.0
  %417 = vmatprep.subr.mxu0 0.0
  %418 = vmatpush1.msra.mxu0 0.0
  %419 = vmatprep.subr.mxu0 0.0
  %420 = vmatpush1.msra.mxu0 0.0
  %421 = vmatprep.subr.mxu0 0.0
  %422 = vmatpush1.msra.mxu0 0.0
  %423 = vmatprep.subr.mxu0 0.0
  %424 = vmatpush1.msra.mxu0 0.0
  %425 = vmatprep.subr.mxu0 0.0
  %426 = vmatpush1.msra.mxu0 0.0
  %427 = vmatprep.subr.mxu0 0.0
  %428 = vmatpush1.msra.mxu0 0.0
  %429 = vmatprep.subr.mxu0 0.0
  %430 = vmatpush1.msra.mxu0 0.0
  %431 = vmatprep.subr.mxu0 0.0
  %432 = vmatpush1.msra.mxu0 0.0
  %433 = vmatprep.subr.mxu0 0.0
  %434 = vmatpush1.msra.mxu0 0.0
  %435 = vmatprep.subr.mxu0 0.0
  %436 = vmatpush1.msra.mxu0 0.0
  %437 = vmatprep.subr.mxu0 0.0
  %438 = vmatpush1.msra.mxu0 0.0
  %439 = vmatprep.subr.mxu0 0.0
  %440 = vmatpush1.msra.mxu0 0.0
  %441 = vmatprep.subr.mxu0 0.0
  %442 = vmatpush1.msra.mxu0 0.0
  %443 = vmatprep.subr.mxu0 0.0
  %444 = vmatpush1.msra.mxu0 0.0
  %445 = vmatprep.subr.mxu0 0.0
  %446 = vmatpush1.msra.mxu0 0.0
  %447 = vmatprep.subr.mxu0 0.0
  %448 = vmatpush1.msra.mxu0 0.0
  %449 = vmatprep.subr.mxu0 0.0
  %450 = vmatpush1.msra.mxu0 0.0
  %451 = vmatprep.subr.mxu0 0.0
  %452 = vmatpush1.msra.mxu0 0.0
  %453 = vmatprep.subr.mxu0 0.0
  %454 = vmatpush1.msra.mxu0 0.0
  %455 = vmatprep.subr.mxu0 0.0
  %456 = vmatpush1.msra.mxu0 0.0
  %457 = vmatprep.mubr.f32.mxu0 0.0
  %458 = vmatmul.mubr.f32.gmra.mrb[0].mxu0 %v391
  %v459 = vpop.f32.mrb[0].mxu0
  %v460 = vadd.f32 %v388, %v459
  %v461 = vpop.f32.mrb[0].mxu0
  %462 = vdwg.mxu0
  %vm463 = vcmask 15360
  %v464 = vsel %vm463, %v460, -inf
  %465 = vmax.xlane.f32.xlu0 %v464
  %v466 = vpop.xlane.xlu0 %465
  %v467 = vsub.f32 %v460, %v466
  %v468 = vmul.f32 %v467, 1.442695
  %v469 = vpow.pop %v468
  %v470 = vsel %vm463, %v469, 0.0
  %471 = vadd.xlane.f32.xlu0 %v470
  %v472 = vpop.xlane.xlu0 %471
  %v473 = vrcp.pop %v472
  %v474 = vmul.f32 %v469, %v473
  %475 = vst.msk [vmem:[%s3] sm:$0xff] %vm463, %v474
  // Predicated region
  $region14: #{forward.1} parent=0 // pred_check
    _
  $region15: #{forward.1} parent=0 // pred_check_branch
    %477 = sbr.rel (0) target = $region17
  $region16: #{forward.1} parent=0 // pred_region
    _
  $region17: #{forward.1} parent=0 // pred_fallthru
    _
  // Predicated region
  $region18: #{forward.1} parent=0 // pred_check
    _
  $region19: #{forward.1} parent=0 // pred_check_branch
    %479 = sbr.rel (0) target = $region21
  $region20: #{forward.1} parent=0 // pred_region
    _
  $region21: #{forward.1} parent=0 // pred_fallthru
    _

</llo_original>
